<compile_context>
chip_gen: v7x
topology: tpu7x:2x2x1
jax: 0.10.0
libtpu: 0.0.40
codegen_flags: <defaults>
</compile_context>

<pallas_src>
import jax
import jax.numpy as jnp
from jax.experimental import pallas as pl
from jax.experimental.pallas import tpu as pltpu


def _round_up(n, m):
    return ((n + m - 1) // m) * m


def _make_emb_max_kernel(num_rows, tile_rows, num_tiles, group, pack_k, e_orig,
                         needs_mask, reduce_dtype):
    """Build the kernel body with static shape parameters closed over."""

    def kernel(x_ref, w_ref, b_ref, prob_ref, hat_ref, acc_ref):
        i = pl.program_id(0)

        @pl.when(i == 0)
        def _init():
            acc_ref[...] = jnp.full(acc_ref.shape, -jnp.inf, dtype=acc_ref.dtype)

        x = x_ref[...]                                      # (TN, EK), native dtype
        if x.dtype != reduce_dtype:
            x = x.astype(reduce_dtype)
        if needs_mask:
            neg_inf = jnp.array(-jnp.inf, dtype=reduce_dtype)
            row = jax.lax.broadcasted_iota(jnp.int32, x.shape, 0) + i * tile_rows
            x = jnp.where(row < num_rows, x, neg_inf)       # mask ragged-edge rows

        # VPU-friendly partial reduce: (TN, EK) -> (TN//G, G, EK); max over the
        # leading axis is elementwise max across full vregs (no XLU in hot loop).
        x3 = x.reshape(tile_rows // group, group, x.shape[-1])
        tile_max = jnp.max(x3, axis=0)                      # (G, EK), native dtype
        acc_ref[...] = jnp.maximum(acc_ref[...], tile_max.astype(acc_ref.dtype))

        @pl.when(i == num_tiles - 1)
        def _finalize():
            zp = jnp.max(acc_ref[...], axis=0, keepdims=True)   # (1, EK): one XLU reduce
            if pack_k > 1:
                # Fold lane-packed slots back onto (1, E) with static lane slices.
                z = zp[:, 0:e_orig]
                for j in range(1, pack_k):
                    z = jnp.maximum(z, zp[:, j * e_orig:(j + 1) * e_orig])
            else:
                z = zp
            logit = jnp.sum(z * w_ref[...], axis=-1, keepdims=True) + b_ref[0]
            prob = jax.nn.sigmoid(logit)
            prob_ref[...] = prob.astype(prob_ref.dtype)
            hat_ref[...] = (prob >= 0.5).astype(hat_ref.dtype)

    return kernel


def emb_max_forward(x, w, b, *, tile_rows=None):
    """x: (1, N, E); w: (1, E); b: (1,).  Returns (Y_prob (1,1), Y_hat (1,1))."""
    x2 = jnp.squeeze(x, axis=0)                             # (N, E) — torch squeeze(0)
    n, e = x2.shape

    # Reduce in the input's own floating dtype (max is exact in any float
    # dtype); non-float inputs fall back to f32.
    if jnp.issubdtype(x2.dtype, jnp.floating):
        reduce_dtype = x2.dtype
    else:
        reduce_dtype = jnp.float32

    # Sublane group matching the packed-vreg tiling of the streamed dtype.
    itemsize = jnp.dtype(reduce_dtype).itemsize
    group = 8 * max(1, 4 // itemsize)                       # f32 -> 8, bf16/f16 -> 16

    # Lane-pack small embedding dims so all 128 vreg lanes are used.
    pack_k = 1
    if e < 128 and 128 % e == 0:
        pack_k = 128 // e
        if n % pack_k != 0:
            pad = pack_k - n % pack_k
            x2 = jnp.pad(x2, ((0, pad), (0, 0)), constant_values=-jnp.inf)
        x2 = x2.reshape(-1, pack_k * e)                     # contiguous -> free in HBM

    num_rows, ek = x2.shape

    # Tile rows: multiple of `group`, sized so the double-buffered x tile stays
    # well inside every generation's scoped-VMEM default (v5e 16 MiB ... 32 MiB).
    if tile_rows is None:
        row_bytes = ek * x2.dtype.itemsize
        budget = 8 * 1024 * 1024                            # 2 buffers of <= 4 MiB each
        cap = max(group, (budget // (2 * row_bytes)) // group * group)
        tile_rows = min(_round_up(num_rows, group), cap, 4096)
    tile_rows = max(group, (tile_rows // group) * group)

    num_tiles = pl.cdiv(num_rows, tile_rows)
    needs_mask = (num_rows % tile_rows) != 0

    kernel = _make_emb_max_kernel(num_rows, tile_rows, num_tiles, group, pack_k,
                                  e, needs_mask, reduce_dtype)

    out_shapes = (
        jax.ShapeDtypeStruct((1, 1), jnp.float32),          # Y_prob
        jax.ShapeDtypeStruct((1, 1), jnp.float32),          # Y_hat
    )
    prob, hat = pl.pallas_call(
        kernel,
        out_shape=out_shapes,
        grid=(num_tiles,),
        in_specs=[
            pl.BlockSpec((tile_rows, ek), lambda i: (i, 0)),      # streamed x tiles
            pl.BlockSpec((1, e), lambda i: (0, 0)),               # resident weight
            pl.BlockSpec(memory_space=pltpu.MemorySpace.SMEM),    # bias scalar
        ],
        out_specs=(
            pl.BlockSpec((1, 1), lambda i: (0, 0)),
            pl.BlockSpec((1, 1), lambda i: (0, 0)),
        ),
        scratch_shapes=[pltpu.VMEM((group, ek), jnp.float32)],
        compiler_params=pltpu.CompilerParams(
            dimension_semantics=("arbitrary",)),
    )(x2, w.astype(jnp.float32), b.reshape(1).astype(jnp.float32))
    return prob, hat


def _reference(x, w, b):
    z = jnp.max(x[0].astype(jnp.float32), axis=0, keepdims=True)      # (1, E)
    logit = jnp.sum(z * w.astype(jnp.float32), axis=-1, keepdims=True) \
        + b.astype(jnp.float32)
    p = jax.nn.sigmoid(logit)
    return p, (p >= 0.5).astype(jnp.float32)


if __name__ == "__main__":
    key = jax.random.PRNGKey(0)

    cases = [
        # (name, N instances, embed E, input dtype, explicit tile_rows)
        ("multi_tile_f32", 300, 256, jnp.float32, 128),   # 2 full tiles + ragged tile
        ("lane_packed_small_E", 13, 32, jnp.float32, None),
        ("bf16_stream", 64, 128, jnp.bfloat16, None),
        ("default_embed_1024", 16, 1024, jnp.float32, None),
    ]

    for name, n, e, dtype, tr in cases:
        key, kx, kw, kb = jax.random.split(key, 4)
        x = jax.random.normal(kx, (1, n, e), dtype=jnp.float32).astype(dtype)
        bound = 1.0 / (e ** 0.5)                          # nn.Linear default init range
        w = jax.random.uniform(kw, (1, e), minval=-bound, maxval=bound,
                               dtype=jnp.float32)
        b = jax.random.uniform(kb, (1,), minval=-bound, maxval=bound,
                               dtype=jnp.float32)

        y_prob, y_hat = emb_max_forward(x, w, b, tile_rows=tr)
        jax.block_until_ready((y_prob, y_hat))

        p_ref, h_ref = _reference(x, w, b)
        assert jnp.allclose(y_prob, p_ref, atol=1e-5), (name, y_prob, p_ref)
        assert jnp.allclose(y_hat, h_ref), (name, y_hat, h_ref)

    print("KERNEL_OK")
</pallas_src>

<mosaic_0001>
module attributes {stable_mosaic.version = 11 : i64} {
  func.func @kernel(%arg0: i32, %arg1: memref<128x256xf32, #tpu.memory_space<vmem>>, %arg2: memref<1x256xf32, #tpu.memory_space<vmem>>, %arg3: memref<1xf32, #tpu.memory_space<smem>>, %arg4: memref<1x1xf32, #tpu.memory_space<vmem>>, %arg5: memref<1x1xf32, #tpu.memory_space<vmem>>, %arg6: memref<8x256xf32, #tpu.memory_space<vmem>>) attributes {dimension_semantics = [#tpu.dimension_semantics<arbitrary>], iteration_bounds = array<i64: 3>, scalar_prefetch = 0 : i64, scratch_operands = 1 : i64, tpu.core_type = #tpu.core_type<tc>, window_params = [{transform_indices = @transform_0, window_bounds = array<i64: 128, 256>}, {pipeline_mode = #tpu.pipeline_mode<synchronous>, transform_indices = @transform_1, window_bounds = array<i64: 1, 256>}, {transform_indices = @transform_2, window_bounds = array<i64: 1>}, {pipeline_mode = #tpu.pipeline_mode<synchronous>, transform_indices = @transform_3, window_bounds = array<i64: 1, 1>}, {pipeline_mode = #tpu.pipeline_mode<synchronous>, transform_indices = @transform_4, window_bounds = array<i64: 1, 1>}]} {
    %c0_i32 = arith.constant 0 : i32
    %0 = arith.cmpi eq, %arg0, %c0_i32 : i32
    %1 = arith.extui %0 : i1 to i32
    %c0_i32_0 = arith.constant 0 : i32
    %2 = arith.cmpi ne, %1, %c0_i32_0 : i32
    scf.if %2 {
      %cst_8 = arith.constant 0xFF800000 : f32
      %20 = vector.broadcast %cst_8 : f32 to vector<8x256xf32>
      %c0_9 = arith.constant 0 : index
      %c0_10 = arith.constant 0 : index
      %21 = vector.load %arg6[%c0_9, %c0_10] : memref<8x256xf32, #tpu.memory_space<vmem>>, vector<8x256xf32>
      tpu.vector_store %arg6[%c0_9, %c0_10], %20 {strides = array<i32>} : memref<8x256xf32, #tpu.memory_space<vmem>>, vector<8x256xf32>,
    } else {
    }
    %c0 = arith.constant 0 : index
    %c0_1 = arith.constant 0 : index
    %3 = vector.load %arg1[%c0, %c0_1] : memref<128x256xf32, #tpu.memory_space<vmem>>, vector<128x256xf32>
    %4 = tpu.iota {dimensions = array<i32: 0>} : vector<128x256xi32>
    %c128_i32 = arith.constant 128 : i32
    %5 = arith.muli %arg0, %c128_i32 : i32
    %6 = vector.broadcast %5 : i32 to vector<128x256xi32>
    %7 = arith.addi %4, %6 : vector<128x256xi32>
    %c300_i32 = arith.constant 300 : i32
    %8 = vector.broadcast %c300_i32 : i32 to vector<128x256xi32>
    %9 = arith.cmpi slt, %7, %8 : vector<128x256xi32>
    %cst = arith.constant 0xFF800000 : f32
    %10 = vector.broadcast %cst : f32 to vector<128x256xf32>
    %11 = arith.select %9, %3, %10 : vector<128x256xi1>, vector<128x256xf32>
    %12 = vector.shape_cast %11 : vector<128x256xf32> to vector<16x8x256xf32>
    %cst_2 = arith.constant dense<0xFF800000> : vector<8x256xf32>
    %13 = vector.multi_reduction <maximumf>, %12, %cst_2 [0] : vector<16x8x256xf32> to vector<8x256xf32>
    %c0_3 = arith.constant 0 : index
    %c0_4 = arith.constant 0 : index
    %14 = vector.load %arg6[%c0_3, %c0_4] : memref<8x256xf32, #tpu.memory_space<vmem>>, vector<8x256xf32>
    %15 = arith.maximumf %14, %13 : vector<8x256xf32>
    %c0_5 = arith.constant 0 : index
    %c0_6 = arith.constant 0 : index
    %16 = vector.load %arg6[%c0_5, %c0_6] : memref<8x256xf32, #tpu.memory_space<vmem>>, vector<8x256xf32>
    tpu.vector_store %arg6[%c0_5, %c0_6], %15 {strides = array<i32>} : memref<8x256xf32, #tpu.memory_space<vmem>>, vector<8x256xf32>,
    %c2_i32 = arith.constant 2 : i32
    %17 = arith.cmpi eq, %arg0, %c2_i32 : i32
    %18 = arith.extui %17 : i1 to i32
    %c0_i32_7 = arith.constant 0 : i32
    %19 = arith.cmpi ne, %18, %c0_i32_7 : i32
    scf.if %19 {
      %c0_8 = arith.constant 0 : index
      %c0_9 = arith.constant 0 : index
      %20 = vector.load %arg6[%c0_8, %c0_9] : memref<8x256xf32, #tpu.memory_space<vmem>>, vector<8x256xf32>
      %cst_10 = arith.constant dense<0xFF800000> : vector<256xf32>
      %21 = vector.multi_reduction <maximumf>, %20, %cst_10 [0] : vector<8x256xf32> to vector<256xf32>
      %22 = vector.shape_cast %21 : vector<256xf32> to vector<1x256xf32>
      %c0_11 = arith.constant 0 : index
      %c0_12 = arith.constant 0 : index
      %23 = vector.load %arg2[%c0_11, %c0_12] : memref<1x256xf32, #tpu.memory_space<vmem>>, vector<1x256xf32>
      %24 = arith.mulf %22, %23 : vector<1x256xf32>
      %cst_13 = arith.constant dense<0.000000e+00> : vector<1xf32>
      %25 = vector.multi_reduction <add>, %24, %cst_13 [1] : vector<1x256xf32> to vector<1xf32>
      %26 = vector.shape_cast %25 : vector<1xf32> to vector<1x1xf32>
      %c0_14 = arith.constant 0 : index
      %27 = memref.load %arg3[%c0_14] : memref<1xf32, #tpu.memory_space<smem>>
      %28 = vector.broadcast %27 : f32 to vector<1x1xf32>
      %29 = arith.addf %26, %28 : vector<1x1xf32>
      %30 = arith.negf %29 : vector<1x1xf32>
      %31 = math.exp %30 : vector<1x1xf32>
      %cst_15 = arith.constant 1.000000e+00 : f32
      %32 = vector.broadcast %cst_15 : f32 to vector<1x1xf32>
      %33 = arith.addf %32, %31 : vector<1x1xf32>
      %34 = arith.divf %32, %33 : vector<1x1xf32>
      %c0_16 = arith.constant 0 : index
      %c0_17 = arith.constant 0 : index
      %35 = vector.load %arg4[%c0_16, %c0_17] : memref<1x1xf32, #tpu.memory_space<vmem>>, vector<1x1xf32>
      tpu.vector_store %arg4[%c0_16, %c0_17], %34 {strides = array<i32>} : memref<1x1xf32, #tpu.memory_space<vmem>>, vector<1x1xf32>,
      %cst_18 = arith.constant 5.000000e-01 : f32
      %36 = vector.broadcast %cst_18 : f32 to vector<1x1xf32>
      %37 = arith.cmpf oge, %34, %36 : vector<1x1xf32>
      %38 = arith.extui %37 : vector<1x1xi1> to vector<1x1xi32>
      %39 = arith.sitofp %38 : vector<1x1xi32> to vector<1x1xf32>
      %c0_19 = arith.constant 0 : index
      %c0_20 = arith.constant 0 : index
      %40 = vector.load %arg5[%c0_19, %c0_20] : memref<1x1xf32, #tpu.memory_space<vmem>>, vector<1x1xf32>
      tpu.vector_store %arg5[%c0_19, %c0_20], %39 {strides = array<i32>} : memref<1x1xf32, #tpu.memory_space<vmem>>, vector<1x1xf32>,
    } else {
    }
    return
  }
  func.func @transform_0(%arg0: i32) -> (i32, i32) {
    %c0_i32 = arith.constant 0 : i32
    %c0_i32_0 = arith.constant 0 : i32
    return %arg0, %c0_i32 : i32, i32
  }
  func.func @transform_1(%arg0: i32) -> (i32, i32) {
    %c0_i32 = arith.constant 0 : i32
    %c0_i32_0 = arith.constant 0 : i32
    %c0_i32_1 = arith.constant 0 : i32
    return %c0_i32, %c0_i32_0 : i32, i32
  }
  func.func @transform_2(%arg0: i32) -> i32 {
    %c0_i32 = arith.constant 0 : i32
    %c0_i32_0 = arith.constant 0 : i32
    return %c0_i32 : i32
  }
  func.func @transform_3(%arg0: i32) -> (i32, i32) {
    %c0_i32 = arith.constant 0 : i32
    %c0_i32_0 = arith.constant 0 : i32
    %c0_i32_1 = arith.constant 0 : i32
    return %c0_i32, %c0_i32_0 : i32, i32
  }
  func.func @transform_4(%arg0: i32) -> (i32, i32) {
    %c0_i32 = arith.constant 0 : i32
    %c0_i32_0 = arith.constant 0 : i32
    %c0_i32_1 = arith.constant 0 : i32
    return %c0_i32, %c0_i32_0 : i32, i32
  }
}

</mosaic_0001>

<llo_original>
// kernel: tpu_custom_call.1
$region0: #{tpu_custom_call.1}
  #allocation0 [shape = 'u32[]', space=smem, size = 0x4, offset = 0x4, fixed_abs, tag = 'smem constant byte address 0x4 - core index']
  #allocation1 [shape = 'u32[144,128]{1,0:T(1,128)}', space=vmem, size = 0x12000, scoped, tag = 'internal scratch']
  #allocation2 [shape = 'f32[8,256]{1,0:T(8,128)}', space=vmem, size = 0x2000, scoped, tag = 'scratch operand']
  #allocation3 [shape = 'f32[1]{0:T(128)S(6)}', space=smem, size = 0x200, scoped, tag = 'scoped memory for tpu_custom_call.1']
  %s0 = inlined_call_operand.hbm [shape: f32[300,256], index: 0, kind: input, shape index: {}]
  %s1 = inlined_call_operand.vmem [shape: f32[1,256], index: 1, kind: input, shape index: {}]
  %s2 = inlined_call_operand.<no memory space> [shape: f32[1], index: 2, kind: input, shape index: {}]
  %s3 = inlined_call_operand.hbm [shape: f32[1,1], index: 3, kind: output, shape index: {0}]
  %s4 = inlined_call_operand.hbm [shape: f32[1,1], index: 4, kind: output, shape index: {1}]
  %5 = xla_tuple %s3, %s4
  %s6 = sld [smem:[#allocation0]]
  $region65: #{tpu_custom_call.1} parent=0
    _
  %s8 = ssub.s32 1, %s6
  %s9 = scalar_select 0, %s8, %s6
  %10 = sst [smem:[#allocation3]] %s2
  $region1: #{tpu_custom_call.1} parent=0
    #allocation4 [shape = 'u8[262144]{0}', space=vmem, size = 0x40000, scoped, tag = 'input window, operand 0']
    #allocation5 [shape = 's32[2]{0}', space=sflag, size = 0x8, scoped, tag = 'scoped memory for tpu_custom_call.1']
    #allocation6 [shape = 's32[2]{0}', space=sflag, size = 0x8, scoped, tag = 'scoped memory for tpu_custom_call.1']
    #allocation7 [shape = 'u8[512]{0}', space=vmem, size = 0x400, scoped, tag = 'output window, operand 0, single buffered']
    #allocation8 [shape = 'u8[512]{0}', space=vmem, size = 0x400, scoped, tag = 'output window, operand 1, single buffered']
    #allocation9 [shape = 's32[1]{0}', space=sflag, size = 0x4, scoped, tag = 'scoped memory for tpu_custom_call.1']
    %11 = vsyncpa [#allocation5], 0
    %s12 = scalar_lea.sflag [#allocation5], 1
    %13 = vsyncpa %s12, 0
    %14 = vsyncpa [#allocation6], 0
    %15 = vsyncpa [#allocation9], 0
    loop: start=0, step=1, limit=5
    $region2: #{tpu_custom_call.1} parent=1 // loop_pre_header
      _
    $region3: #{tpu_custom_call.1} parent=1 // loop_header
      %s17 = sphi 0, %s21
      %p18 = scmp.ge.s32.totalorder %s17, 5
      %s27 = sphi 0, %s29
      %s30 = sphi 0, %s27
      %s31 = sphi 0, %s30
      %s47 = sphi 0, %s31
      %s51 = sphi 0, %s51
      %s53 = sphi 0, %s51
      %s54 = sphi 0, %s53
      %s68 = sphi 0, %s54
      %s72 = sphi 0, %s72
      %s74 = sphi 0, %s72
      %s75 = sphi 0, %s74
      %s89 = sphi 0, %s75
      %s93 = sphi 0, %s93
      %s95 = sphi 0, %s93
      %s96 = sphi 0, %s95
      %s110 = sphi 0, %s96
      %s114 = sphi 0, %s114
      %s116 = sphi 0, %s114
      %s117 = sphi 0, %s116
      %s131 = sphi 0, %s117
    $region4: #{tpu_custom_call.1} parent=1 // loop_header_branch
      %20 = sbr.rel (%p18) target = $region8
    $region5: #{tpu_custom_call.1} parent=1 // loop_body
      %s22 = ssub.s32 %s17, 1
      %s23 = ssub.s32 %s17, 2
      %s24 = sadd.s32 %s17, 1
      %s25 = ssub.s32 %s17, %s24
      %p26 = scmp.eq.s32.totalorder %s25, 0
      %s28 = sadd.s32 %s27, 1
      %s29 = scalar_select %p26, %s27, %s28
      %p32 = pneg %p26
      %p33 = scmp.eq.s32.totalorder %s17, 2
      %p34 = por %p32, %p33
      %p35 = scmp.ne.s32.totalorder %s27, %s30
      %p36 = scmp.eq.s32.totalorder %s17, 0
      %p37 = por %p35, %p36
      %p38 = scmp.ne.s32.totalorder %s27, %s30
      %p39 = scmp.eq.s32.totalorder %s22, 2
      %p40 = por %p38, %p39
      %p41 = scmp.ne.s32.totalorder %s30, %s31
      %p42 = scmp.eq.s32.totalorder %s22, 0
      %p43 = por %p41, %p42
      %p44 = scmp.ne.s32.totalorder %s30, %s31
      %p45 = scmp.eq.s32.totalorder %s23, 2
      %p46 = por %p44, %p45
      %p48 = scmp.ne.s32.totalorder %s31, %s47
      %p49 = scmp.eq.s32.totalorder %s23, 0
      %p50 = por %p48, %p49
      %s52 = sadd.s32 %s51, 1
      %p55 = scmp.eq.s32.totalorder %s17, 2
      %p56 = scmp.ne.s32.totalorder %s51, %s53
      %p57 = scmp.eq.s32.totalorder %s17, 0
      %p58 = por %p56, %p57
      %p59 = scmp.ne.s32.totalorder %s51, %s53
      %p60 = scmp.eq.s32.totalorder %s22, 2
      %p61 = por %p59, %p60
      %p62 = scmp.ne.s32.totalorder %s53, %s54
      %p63 = scmp.eq.s32.totalorder %s22, 0
      %p64 = por %p62, %p63
      %p65 = scmp.ne.s32.totalorder %s53, %s54
      %p66 = scmp.eq.s32.totalorder %s23, 2
      %p67 = por %p65, %p66
      %p69 = scmp.ne.s32.totalorder %s54, %s68
      %p70 = scmp.eq.s32.totalorder %s23, 0
      %p71 = por %p69, %p70
      %s73 = sadd.s32 %s72, 1
      %p76 = scmp.eq.s32.totalorder %s17, 2
      %p77 = scmp.ne.s32.totalorder %s72, %s74
      %p78 = scmp.eq.s32.totalorder %s17, 0
      %p79 = por %p77, %p78
      %p80 = scmp.ne.s32.totalorder %s72, %s74
      %p81 = scmp.eq.s32.totalorder %s22, 2
      %p82 = por %p80, %p81
      %p83 = scmp.ne.s32.totalorder %s74, %s75
      %p84 = scmp.eq.s32.totalorder %s22, 0
      %p85 = por %p83, %p84
      %p86 = scmp.ne.s32.totalorder %s74, %s75
      %p87 = scmp.eq.s32.totalorder %s23, 2
      %p88 = por %p86, %p87
      %p90 = scmp.ne.s32.totalorder %s75, %s89
      %p91 = scmp.eq.s32.totalorder %s23, 0
      %p92 = por %p90, %p91
      %s94 = sadd.s32 %s93, 1
      %p97 = scmp.eq.s32.totalorder %s17, 2
      %p98 = scmp.ne.s32.totalorder %s93, %s95
      %p99 = scmp.eq.s32.totalorder %s17, 0
      %p100 = por %p98, %p99
      %p101 = scmp.ne.s32.totalorder %s93, %s95
      %p102 = scmp.eq.s32.totalorder %s22, 2
      %p103 = por %p101, %p102
      %p104 = scmp.ne.s32.totalorder %s95, %s96
      %p105 = scmp.eq.s32.totalorder %s22, 0
      %p106 = por %p104, %p105
      %p107 = scmp.ne.s32.totalorder %s95, %s96
      %p108 = scmp.eq.s32.totalorder %s23, 2
      %p109 = por %p107, %p108
      %p111 = scmp.ne.s32.totalorder %s96, %s110
      %p112 = scmp.eq.s32.totalorder %s23, 0
      %p113 = por %p111, %p112
      %s115 = sadd.s32 %s114, 1
      %p118 = scmp.eq.s32.totalorder %s17, 2
      %p119 = scmp.ne.s32.totalorder %s114, %s116
      %p120 = scmp.eq.s32.totalorder %s17, 0
      %p121 = por %p119, %p120
      %p122 = scmp.ne.s32.totalorder %s114, %s116
      %p123 = scmp.eq.s32.totalorder %s22, 2
      %p124 = por %p122, %p123
      %p125 = scmp.ne.s32.totalorder %s116, %s117
      %p126 = scmp.eq.s32.totalorder %s22, 0
      %p127 = por %p125, %p126
      %p128 = scmp.ne.s32.totalorder %s116, %s117
      %p129 = scmp.eq.s32.totalorder %s23, 2
      %p130 = por %p128, %p129
      %p132 = scmp.ne.s32.totalorder %s117, %s131
      %p133 = scmp.eq.s32.totalorder %s23, 0
      %p134 = por %p132, %p133
      %p135 = scmp.le.s32.totalorder 1, %s17
      %p136 = scmp.lt.s32.totalorder %s17, 4
      %p137 = pnand %p135, %p136
      %p138 = pneg %p137
      // Predicated region
      $region9: #{tpu_custom_call.1} parent=5 // pred_check
        _
      $region10: #{tpu_custom_call.1} parent=5 // pred_check_branch
        %140 = sbr.rel (%p137) target = $region12
      $region11: #{tpu_custom_call.1} parent=5 // pred_region
        %s141 = ssub.s32 %s17, 1
        // Predicated region
        $region13: #{tpu_custom_call.1} parent=11 // pred_check
          %p142 = pneg %p64
        $region14: #{tpu_custom_call.1} parent=11 // pred_check_branch
          %144 = sbr.rel (%p142) target = $region16
        $region15: #{tpu_custom_call.1} parent=11 // pred_region
          _
        $region16: #{tpu_custom_call.1} parent=11 // pred_fallthru
          _
        // Predicated region
        $region17: #{tpu_custom_call.1} parent=11 // pred_check
          %p145 = pneg %p85
        $region18: #{tpu_custom_call.1} parent=11 // pred_check_branch
          %147 = sbr.rel (%p145) target = $region20
        $region19: #{tpu_custom_call.1} parent=11 // pred_region
          _
        $region20: #{tpu_custom_call.1} parent=11 // pred_fallthru
          _
      $region12: #{tpu_custom_call.1} parent=5 // pred_fallthru
        _
      %p148 = scmp.lt.s32.totalorder %s17, 3
      // Predicated region
      $region21: #{tpu_custom_call.1} parent=5 // pred_check
        %p149 = pneg %p148
      $region22: #{tpu_custom_call.1} parent=5 // pred_check_branch
        %151 = sbr.rel (%p149) target = $region24
      $region23: #{tpu_custom_call.1} parent=5 // pred_region
        // Predicated region
        $region25: #{tpu_custom_call.1} parent=23 // pred_check
          %p152 = pneg %p37
        $region26: #{tpu_custom_call.1} parent=23 // pred_check_branch
          %154 = sbr.rel (%p152) target = $region28
        $region27: #{tpu_custom_call.1} parent=23 // pred_region
          %s155 = sand.u32 %s27, 1
          %s156 = scalar_lea.sflag [#allocation5], %s155
          %s157 = sand.u32 %s27, 1
          %s158 = smul.addr %s157, 256
          %s159 = scalar_lea.vmem [#allocation4], %s158
          %s160 = smul.u32 16, %s17
          %s161 = ssub.s32 38, %s160
          %p162 = scmp.lt.s32.totalorder %s161, 16
          %s163 = scalar_select %p162, %s161, 16
          %s164 = smul.u32 128, %s163
          %s165 = smul.u32 %s164, 2
          %s167 = ssub.s32 4096, %s165
          %168 = vsyncadd %s156, %s167
          %p169 = scmp.ne.s32.totalorder 0, %s165
          %s170 = smul.addr %s160, 2
          %s171 = smul.addr %s170, 128
          %s172 = scalar_lea.hbm %s0, %s171
          %s173 = smul.u32 16, %s163
          %s174 = sshll.u32 %s159, 4
          %s175 = int_to_ptr.vmem [resolvable:$true] %s174
          %s176 = sshll.u32 %s173, 4
          %180 = dma.hbm_to_vmem [thread:$0]  (%p169), %s172, %s176, %s175, %s156, 256, 256, 16
        $region28: #{tpu_custom_call.1} parent=23 // pred_fallthru
          _
      $region24: #{tpu_custom_call.1} parent=5 // pred_fallthru
        _
      %p181 = scmp.le.s32.totalorder 1, %s17
      %p182 = scmp.lt.s32.totalorder %s17, 4
      %p183 = pnand %p181, %p182
      %p184 = pneg %p183
      // Predicated region
      $region29: #{tpu_custom_call.1} parent=5 // pred_check
        _
      $region30: #{tpu_custom_call.1} parent=5 // pred_check_branch
        %186 = sbr.rel (%p183) target = $region32
      $region31: #{tpu_custom_call.1} parent=5 // pred_region
        %s187 = ssub.s32 %s17, 1
        %s188 = sand.u32 %s30, 1
        %s189 = scalar_lea.sflag [#allocation5], %s188
        %s190 = sand.u32 %s30, 1
        %s191 = smul.addr %s190, 256
        %s192 = scalar_lea.vmem [#allocation4], %s191
        // Predicated region
        $region33: #{tpu_custom_call.1} parent=31 // pred_check
          %p193 = pneg %p43
        $region34: #{tpu_custom_call.1} parent=31 // pred_check_branch
          %195 = sbr.rel (%p193) target = $region36
        $region35: #{tpu_custom_call.1} parent=31 // pred_region
          %196 = dma.done %s189, 4096
        $region36: #{tpu_custom_call.1} parent=31 // pred_fallthru
          _
        %s197 = sand.u32 %s30, 1
        %s198 = scalar_lea.sflag [#allocation5], %s197
        %s199 = sand.u32 %s30, 1
        %s200 = smul.addr %s199, 256
        %s201 = scalar_lea.vmem [#allocation4], %s200
        %p202 = pneg %p43
        %p203 = pneg %p40
        %p204 = pneg %p64
        %p205 = pneg %p61
        %p206 = pneg %p85
        %p207 = pneg %p82
        %p208 = pneg %p106
        %p209 = pneg %p103
        %p210 = pneg %p127
        %p211 = pneg %p124
        %s212 = smul.u32 16, %s22
        %s213 = ssub.s32 38, %s212
        %p214 = scmp.lt.s32.totalorder %s213, 16
        %s215 = scalar_select %p214, %s213, 16
        %s216 = smul.u32 128, %s215
        %s217 = smul.u32 %s216, 2
        %p218 = scmp.eq.s32.totalorder %s22, 0
        // Predicated region
        $region37: #{tpu_custom_call.1} parent=31 // pred_check
          %p219 = pneg %p218
        $region38: #{tpu_custom_call.1} parent=31 // pred_check_branch
          %221 = sbr.rel (%p219) target = $region40
        $region39: #{tpu_custom_call.1} parent=31 // pred_region
          %222 = vst [vmem:[#allocation2] sm:$0xff] -inf
          %223 = vst [vmem:[#allocation2 + $0x8] sm:$0xff] -inf
        $region40: #{tpu_custom_call.1} parent=31 // pred_fallthru
          _
        %v224 = vld [vmem:[%s192] sm:$0xff]
        %v225 = vld [vmem:[%s192 + $0x8] sm:$0xff]
        %v226 = vld [vmem:[%s192 + $0x10] sm:$0xff]
        %v227 = vld [vmem:[%s192 + $0x18] sm:$0xff]
        %v228 = vld [vmem:[%s192 + $0x20] sm:$0xff]
        %v229 = vld [vmem:[%s192 + $0x28] sm:$0xff]
        %v230 = vld [vmem:[%s192 + $0x30] sm:$0xff]
        %v231 = vld [vmem:[%s192 + $0x38] sm:$0xff]
        %v232 = vld [vmem:[%s192 + $0x40] sm:$0xff]
        %v233 = vld [vmem:[%s192 + $0x48] sm:$0xff]
        %v234 = vld [vmem:[%s192 + $0x50] sm:$0xff]
        %v235 = vld [vmem:[%s192 + $0x58] sm:$0xff]
        %v236 = vld [vmem:[%s192 + $0x60] sm:$0xff]
        %v237 = vld [vmem:[%s192 + $0x68] sm:$0xff]
        %v238 = vld [vmem:[%s192 + $0x70] sm:$0xff]
        %v239 = vld [vmem:[%s192 + $0x78] sm:$0xff]
        %v240 = vld [vmem:[%s192 + $0x80] sm:$0xff]
        %v241 = vld [vmem:[%s192 + $0x88] sm:$0xff]
        %v242 = vld [vmem:[%s192 + $0x90] sm:$0xff]
        %v243 = vld [vmem:[%s192 + $0x98] sm:$0xff]
        %v244 = vld [vmem:[%s192 + $0xa0] sm:$0xff]
        %v245 = vld [vmem:[%s192 + $0xa8] sm:$0xff]
        %v246 = vld [vmem:[%s192 + $0xb0] sm:$0xff]
        %v247 = vld [vmem:[%s192 + $0xb8] sm:$0xff]
        %v248 = vld [vmem:[%s192 + $0xc0] sm:$0xff]
        %v249 = vld [vmem:[%s192 + $0xc8] sm:$0xff]
        %v250 = vld [vmem:[%s192 + $0xd0] sm:$0xff]
        %v251 = vld [vmem:[%s192 + $0xd8] sm:$0xff]
        %v252 = vld [vmem:[%s192 + $0xe0] sm:$0xff]
        %v253 = vld [vmem:[%s192 + $0xe8] sm:$0xff]
        %v254 = vld [vmem:[%s192 + $0xf0] sm:$0xff]
        %v255 = vld [vmem:[%s192 + $0xf8] sm:$0xff]
        %v256 = vlaneseq
        %v257 = vshrl.u32 %v256, 7
        %v258 = vadd.s32 %v257, 8
        %v259 = vadd.s32 %v257, 16
        %v260 = vadd.s32 %v257, 24
        %v261 = vadd.s32 %v257, 32
        %v262 = vadd.s32 %v257, 40
        %v263 = vadd.s32 %v257, 48
        %v264 = vadd.s32 %v257, 56
        %v265 = vadd.s32 %v257, 64
        %v266 = vadd.s32 %v257, 72
        %v267 = vadd.s32 %v257, 80
        %v268 = vadd.s32 %v257, 88
        %v269 = vadd.s32 %v257, 96
        %v270 = vadd.s32 %v257, 104
        %v271 = vadd.s32 %v257, 112
        %v272 = vadd.s32 %v257, 120
        %s273 = smul.u32 %s22, 128
        %v274 = vstv %s273
        %v275 = vadd.s32 %v257, %v274
        %v276 = vadd.s32 %v258, %v274
        %v277 = vadd.s32 %v259, %v274
        %v278 = vadd.s32 %v260, %v274
        %v279 = vadd.s32 %v261, %v274
        %v280 = vadd.s32 %v262, %v274
        %v281 = vadd.s32 %v263, %v274
        %v282 = vadd.s32 %v264, %v274
        %v283 = vadd.s32 %v265, %v274
        %v284 = vadd.s32 %v266, %v274
        %v285 = vadd.s32 %v267, %v274
        %v286 = vadd.s32 %v268, %v274
        %v287 = vadd.s32 %v269, %v274
        %v288 = vadd.s32 %v270, %v274
        %v289 = vadd.s32 %v271, %v274
        %v290 = vadd.s32 %v272, %v274
        %vm291 = vcmp.lt.s32.totalorder %v275, 300
        %vm292 = vcmp.lt.s32.totalorder %v276, 300
        %vm293 = vcmp.lt.s32.totalorder %v277, 300
        %vm294 = vcmp.lt.s32.totalorder %v278, 300
        %vm295 = vcmp.lt.s32.totalorder %v279, 300
        %vm296 = vcmp.lt.s32.totalorder %v280, 300
        %vm297 = vcmp.lt.s32.totalorder %v281, 300
        %vm298 = vcmp.lt.s32.totalorder %v282, 300
        %vm299 = vcmp.lt.s32.totalorder %v283, 300
        %vm300 = vcmp.lt.s32.totalorder %v284, 300
        %vm301 = vcmp.lt.s32.totalorder %v285, 300
        %vm302 = vcmp.lt.s32.totalorder %v286, 300
        %vm303 = vcmp.lt.s32.totalorder %v287, 300
        %vm304 = vcmp.lt.s32.totalorder %v288, 300
        %vm305 = vcmp.lt.s32.totalorder %v289, 300
        %vm306 = vcmp.lt.s32.totalorder %v290, 300
        %v307 = vsel %vm291, %v224, -inf
        %v308 = vsel %vm291, %v225, -inf
        %v309 = vsel %vm292, %v226, -inf
        %v310 = vsel %vm292, %v227, -inf
        %v311 = vsel %vm293, %v228, -inf
        %v312 = vsel %vm293, %v229, -inf
        %v313 = vsel %vm294, %v230, -inf
        %v314 = vsel %vm294, %v231, -inf
        %v315 = vsel %vm295, %v232, -inf
        %v316 = vsel %vm295, %v233, -inf
        %v317 = vsel %vm296, %v234, -inf
        %v318 = vsel %vm296, %v235, -inf
        %v319 = vsel %vm297, %v236, -inf
        %v320 = vsel %vm297, %v237, -inf
        %v321 = vsel %vm298, %v238, -inf
        %v322 = vsel %vm298, %v239, -inf
        %v323 = vsel %vm299, %v240, -inf
        %v324 = vsel %vm299, %v241, -inf
        %v325 = vsel %vm300, %v242, -inf
        %v326 = vsel %vm300, %v243, -inf
        %v327 = vsel %vm301, %v244, -inf
        %v328 = vsel %vm301, %v245, -inf
        %v329 = vsel %vm302, %v246, -inf
        %v330 = vsel %vm302, %v247, -inf
        %v331 = vsel %vm303, %v248, -inf
        %v332 = vsel %vm303, %v249, -inf
        %v333 = vsel %vm304, %v250, -inf
        %v334 = vsel %vm304, %v251, -inf
        %v335 = vsel %vm305, %v252, -inf
        %v336 = vsel %vm305, %v253, -inf
        %v337 = vsel %vm306, %v254, -inf
        %v338 = vsel %vm306, %v255, -inf
        %v339 = vmax.f32 %v307, %v311
        %v340 = vmax.f32 %v309, %v313
        %v341 = vmax.f32 %v339, %v315
        %v342 = vmax.f32 %v340, %v317
        %v343 = vmax.f32 %v341, %v319
        %v344 = vmax.f32 %v342, %v321
        %v345 = vmax.f32 %v343, %v323
        %v346 = vmax.f32 %v344, %v325
        %v347 = vmax.f32 %v345, %v327
        %v348 = vmax.f32 %v346, %v329
        %v349 = vmax.f32 %v347, %v331
        %v350 = vmax.f32 %v348, %v333
        %v351 = vmax.f32 %v349, %v335
        %v352 = vmax.f32 %v350, %v337
        %v353 = vmax.f32 %v351, %v352
        %v354 = vmax.f32 %v308, %v312
        %v355 = vmax.f32 %v310, %v314
        %v356 = vmax.f32 %v354, %v316
        %v357 = vmax.f32 %v355, %v318
        %v358 = vmax.f32 %v356, %v320
        %v359 = vmax.f32 %v357, %v322
        %v360 = vmax.f32 %v358, %v324
        %v361 = vmax.f32 %v359, %v326
        %v362 = vmax.f32 %v360, %v328
        %v363 = vmax.f32 %v361, %v330
        %v364 = vmax.f32 %v362, %v332
        %v365 = vmax.f32 %v363, %v334
        %v366 = vmax.f32 %v364, %v336
        %v367 = vmax.f32 %v365, %v338
        %v368 = vmax.f32 %v366, %v367
        %v369 = vld [vmem:[#allocation2] sm:$0xff]
        %v370 = vld [vmem:[#allocation2 + $0x8] sm:$0xff]
        %v371 = vmax.f32 %v369, %v353
        %v372 = vmax.f32 %v370, %v368
        %373 = vst [vmem:[#allocation2] sm:$0xff] %v371
        %374 = vst [vmem:[#allocation2 + $0x8] sm:$0xff] %v372
        %p375 = scmp.eq.s32.totalorder %s22, 2
        // Predicated region
        $region41: #{tpu_custom_call.1} parent=31 // pred_check
          %p376 = pneg %p375
        $region42: #{tpu_custom_call.1} parent=31 // pred_check_branch
          %378 = sbr.rel (%p376) target = $region44
        $region43: #{tpu_custom_call.1} parent=31 // pred_region
          %v379 = vld [vmem:[#allocation2] sm:$0xff]
          %v380 = vld [vmem:[#allocation2 + $0x8] sm:$0xff]
          %v381 = vrot.slane %v379, 4
          %v382 = vmax.f32 %v379, %v381
          %v383 = vrot.slane %v382, 2
          %v384 = vmax.f32 %v382, %v383
          %v385 = vrot.slane %v384, 1
          %v386 = vmax.f32 %v384, %v385
          %v387 = vrot.slane %v380, 4
          %v388 = vmax.f32 %v380, %v387
          %v389 = vrot.slane %v388, 2
          %v390 = vmax.f32 %v388, %v389
          %v391 = vrot.slane %v390, 1
          %v392 = vmax.f32 %v390, %v391
          %v393 = vld [vmem:[%s1] sm:$0x3]
          %v395 = vlaneseq
          %v396 = vshrl.u32 %v395, 7
          %v397 = vsub.s32 0, %v396
          %v398 = vrot.slane %v393, %v397
          %v399 = vlaneseq
          %v400 = vshrl.u32 %v399, 7
          %v401 = vsub.s32 1, %v400
          %v402 = vrot.slane %v393, %v401
          %v405 = vmul.f32 %v386, %v398
          %v406 = vmul.f32 %v392, %v402
          %vm407 = vcmask 1040384
          %v408 = vsel %vm407, %v405, 0.0
          %v409 = vsel %vm407, %v406, 0.0
          %v410 = vadd.f32 %v408, %v409
          %411 = vadd.xlane.f32.xlu0 %v410
          %v412 = vpop.xlane.xlu0 %411
          %s413 = sld [smem:[#allocation3]]
          %v414 = vstv %s413
          %v415 = vadd.f32 %v412, %v414
          %v416 = vxor.u32 %v415, 2147483648
          %v417 = vmul.f32 %v416, 1.442695
          %v418 = vpow.pop %v417
          %v419 = vadd.f32 %v418, 1.0
          %v420 = vrcp.pop %v419
          %v421 = vmul.f32 1.0, %v420
          %vm422 = vcmask 0
          %423 = vst.msk [vmem:[#allocation7] sm:$0x1] %vm422, %v421
          %vm424 = vcmp.ge.f32.partialorder %v421, 0.5
          %v425 = vsel %vm424, 1, 0
          %v426 = vcvt.s32.f32 %v425
          %427 = vst.msk [vmem:[#allocation8] sm:$0x1] %vm422, %v426
        $region44: #{tpu_custom_call.1} parent=31 // pred_fallthru
          _
        // Predicated region
        $region45: #{tpu_custom_call.1} parent=31 // pred_check
          %p428 = pneg %p103
        $region46: #{tpu_custom_call.1} parent=31 // pred_check_branch
          %430 = sbr.rel (%p428) target = $region48
        $region47: #{tpu_custom_call.1} parent=31 // pred_region
          %s432 = ssub.s32 16, 16
          %433 = vsyncadd [#allocation6], %s432
          %s435 = sshll.u32 [#allocation7], 4
          %s436 = int_to_ptr.vmem [resolvable:$true] %s435
          %438 = dma.vmem_to_hbm [thread:$0]  %s436, 16, %s3, [#allocation6]
        $region48: #{tpu_custom_call.1} parent=31 // pred_fallthru
          _
        // Predicated region
        $region49: #{tpu_custom_call.1} parent=31 // pred_check
          %p439 = pneg %p124
        $region50: #{tpu_custom_call.1} parent=31 // pred_check_branch
          %441 = sbr.rel (%p439) target = $region52
        $region51: #{tpu_custom_call.1} parent=31 // pred_region
          %s443 = ssub.s32 16, 16
          %444 = vsyncadd [#allocation9], %s443
          %s446 = sshll.u32 [#allocation8], 4
          %s447 = int_to_ptr.vmem [resolvable:$true] %s446
          %449 = dma.vmem_to_hbm [thread:$0]  %s447, 16, %s4, [#allocation9]
        $region52: #{tpu_custom_call.1} parent=31 // pred_fallthru
          _
        // Predicated region
        $region53: #{tpu_custom_call.1} parent=31 // pred_check
          %p450 = pneg %p103
        $region54: #{tpu_custom_call.1} parent=31 // pred_check_branch
          %452 = sbr.rel (%p450) target = $region56
        $region55: #{tpu_custom_call.1} parent=31 // pred_region
          %453 = dma.done [#allocation6], 16
        $region56: #{tpu_custom_call.1} parent=31 // pred_fallthru
          _
        // Predicated region
        $region57: #{tpu_custom_call.1} parent=31 // pred_check
          %p454 = pneg %p124
        $region58: #{tpu_custom_call.1} parent=31 // pred_check_branch
          %456 = sbr.rel (%p454) target = $region60
        $region59: #{tpu_custom_call.1} parent=31 // pred_region
          %457 = dma.done [#allocation9], 16
        $region60: #{tpu_custom_call.1} parent=31 // pred_fallthru
          _
      $region32: #{tpu_custom_call.1} parent=5 // pred_fallthru
        _
      %p458 = scmp.le.s32.totalorder 2, %s17
      // Predicated region
      $region61: #{tpu_custom_call.1} parent=5 // pred_check
        %p459 = pneg %p458
      $region62: #{tpu_custom_call.1} parent=5 // pred_check_branch
        %461 = sbr.rel (%p459) target = $region64
      $region63: #{tpu_custom_call.1} parent=5 // pred_region
        %s462 = ssub.s32 %s17, 2
      $region64: #{tpu_custom_call.1} parent=5 // pred_fallthru
        _
    $region6: #{tpu_custom_call.1} parent=1 // loop_footer
      %s21 = sadd.s32 1, %s17
    $region7: #{tpu_custom_call.1} parent=1 // loop_footer_branch
      %16 = sbr.rel target = $region3
    $region8: #{tpu_custom_call.1} parent=1 // loop_exit
      _
    %463 = vsyncpa [#allocation5], 1
    %s464 = scalar_lea.sflag [#allocation5], 1
    %465 = vsyncpa %s464, 1
    %466 = vsyncpa [#allocation6], 1
    %s467 = scalar_lea.sflag [#allocation6], 1
    %468 = vsyncpa %s467, 1
    %469 = vsyncpa [#allocation9], 1

</llo_original>
